<compile_context>
chip_gen: v6e
topology: v6e:2x2x1
jax: 0.10.0
libtpu: 0.0.40
codegen_flags: <defaults>
</compile_context>

<pallas_src>
import jax
import jax.numpy as jnp
from jax.experimental import pallas as pl
from jax.experimental.pallas import tpu as pltpu


# ---------------------------------------------------------------------------
# VMEM budgeting (generation-aware)
# ---------------------------------------------------------------------------
def _vmem_budget():
    """(planning budget, compiler vmem_limit_bytes) from the physical VMEM."""
    try:
        phys = int(pltpu.get_tpu_info().vmem_capacity_bytes)
    except Exception:
        phys = 64 * 1024 * 1024          # conservative fallback (v7x-sized)
    phys = max(phys, 32 * 1024 * 1024)
    limit = min((phys * 3) // 4, 112 * 1024 * 1024)   # 96 MiB on 128-MiB chips, 48 MiB on v7x
    budget = (limit * 3) // 4                          # headroom for Mosaic internals
    return budget, limit


def _pick_hidden_tile(E, budget):
    """Hidden-dim tile: full E when resident bf16 W1+W2 fit, else a 128-aligned
    divisor of E so each (E, th)/(th, E) weight tile can double-buffer."""
    if 4 * E * E <= budget // 2:                 # W1 + W2 resident (bf16, single buffer)
        return E
    for n_h in range(2, max(2, E // 128) + 1):
        if E % n_h:
            continue
        th = E // n_h
        if th % 128 == 0 and 8 * E * th <= budget // 2:   # double-buffered bf16 tiles
            return th
    # TODO(synk): add an explicit two-level (N, K) weight tiling for E with no
    # 128-aligned divisor that fits; for now keep full E and rely on the raised
    # vmem limit.
    return E


def _pick_tm(M, E, th, budget, x_bytes, out_bytes):
    """Row tile: multiple of 16, fits VMEM, keeps >= ~8 grid steps when M allows
    (>= ~4 steps per v7x TensorCore) without shrinking below 512-row DMAs."""
    min_steps = 8
    bufs = 1 if th == E else 2
    weight_bytes = bufs * 4 * E * th + 8 * (E + th)              # bf16 W tiles + biases
    # per-row VMEM: x/out tiles (double-buffered) + f32 accumulator + f32 dot
    # temporary + f32/bf16 hidden intermediates, plus 25% slack for Mosaic.
    per_row = 2 * E * x_bytes + 2 * E * out_bytes + 8 * E + 6 * th
    per_row += per_row // 4
    cap = (budget - weight_bytes) // per_row
    steps_cap = max(512, -(-M // min_steps))
    m_cap = -(-M // 16) * 16
    tm = min(cap, steps_cap, m_cap, 1024)
    return max(16, (tm // 16) * 16)


# ---------------------------------------------------------------------------
# Kernel: y = gelu(x @ W1 + b1) @ W2 + b2, hidden dim optionally tiled.
# ---------------------------------------------------------------------------
def _mlp_kernel(x_ref, w1_ref, b1_ref, w2_ref, b2_ref, o_ref, acc_ref):
    j = pl.program_id(1)

    @pl.when(j == 0)
    def _():
        acc_ref[...] = jnp.broadcast_to(b2_ref[...], acc_ref.shape)

    x = x_ref[...].astype(jnp.bfloat16)                       # in-kernel cast (no host pass)
    h = jnp.dot(x, w1_ref[...], preferred_element_type=jnp.float32) + b1_ref[...]
    h = jax.nn.gelu(h, approximate=True)                      # tanh form -> EUP slot
    acc_ref[...] += jnp.dot(h.astype(jnp.bfloat16), w2_ref[...],
                            preferred_element_type=jnp.float32)

    @pl.when(j == pl.num_programs(1) - 1)
    def _():
        o_ref[...] = acc_ref[...].astype(o_ref.dtype)


def prepare_projector_params(w1, b1, w2, b2):
    """One-time parameter prep (weights -> bf16, biases -> f32 row vectors)."""
    return (jnp.asarray(w1, jnp.bfloat16),
            jnp.asarray(b1, jnp.float32).reshape(1, -1),
            jnp.asarray(w2, jnp.bfloat16),
            jnp.asarray(b2, jnp.float32).reshape(1, -1))


def mlp_pallas(x2d, w1, b1, w2, b2):
    """gelu(x @ W1 + b1) @ W2 + b2 over an (M, E) token matrix; bf16 output."""
    M, E = x2d.shape
    assert w1.shape == (E, E) and w2.shape == (E, E)
    budget, limit = _vmem_budget()
    th = _pick_hidden_tile(E, budget)
    n_h = E // th
    x_bytes = jnp.dtype(x2d.dtype).itemsize
    out_dtype = jnp.bfloat16
    tm = _pick_tm(M, E, th, budget, x_bytes, 2)
    grid_m = pl.cdiv(M, tm)

    # TODO(synk): for tiny E (<< 128), packing 128 // E tokens per lane row with
    # block-diagonal weights would fill the lanes better than full-extent blocks.
    resident = n_h == 1

    def wspec(shape, imap):
        if resident:
            return pl.BlockSpec(shape, imap, pipeline_mode=pl.Buffered(1))
        return pl.BlockSpec(shape, imap)

    cost = pl.CostEstimate(
        flops=4 * M * E * E,                          # two matmuls
        transcendentals=M * E,                        # tanh GELU
        bytes_accessed=(M * E * x_bytes               # x in
                        + 4 * E * E                   # bf16 weights
                        + 8 * E                       # biases
                        + 2 * M * E),                 # bf16 out
    )

    y = pl.pallas_call(
        _mlp_kernel,
        out_shape=jax.ShapeDtypeStruct((M, E), out_dtype),
        grid_spec=pltpu.PrefetchScalarGridSpec(
            num_scalar_prefetch=0,
            grid=(grid_m, n_h),                       # rows parallel, hidden reduction last
            in_specs=[
                pl.BlockSpec((tm, E), lambda i, j: (i, 0)),          # x rows
                wspec((E, th), lambda i, j: (0, j)),                 # W1 column block
                wspec((1, th), lambda i, j: (0, j)),                 # b1 block
                wspec((th, E), lambda i, j: (j, 0)),                 # W2 row block
                pl.BlockSpec((1, E), lambda i, j: (0, 0),
                             pipeline_mode=pl.Buffered(1)),          # b2 (resident)
            ],
            out_specs=pl.BlockSpec((tm, E), lambda i, j: (i, 0)),
            scratch_shapes=[pltpu.VMEM((tm, E), jnp.float32)],       # f32 accumulator
        ),
        compiler_params=pltpu.CompilerParams(
            dimension_semantics=("parallel", "arbitrary"),
            vmem_limit_bytes=limit,
        ),
        cost_estimate=cost,
    )(x2d, w1, b1, w2, b2)
    return y


# ---------------------------------------------------------------------------
# Module forward
# ---------------------------------------------------------------------------
def patch2pixels_forward(data_dict, params, *, image_shape, patch_size):
    """Forward pass mirroring Patch2Pixels.forward (NCHW image output, bf16)."""
    assert data_dict["type"] == "patch", "Patch2Pixels only works with patch input"
    W, H = image_shape
    X = data_dict["X"]                               # (B, I, 2, S, E)
    B, I, P2, S, E = X.shape
    hp, wp = H // patch_size, W // patch_size
    r = patch_size
    assert S == hp * wp
    assert E % (r * r) == 0
    C = E // (r * r)
    N = B * I * P2

    # '(B I P) ...' flatten + MLP projector (Pallas kernel on flattened tokens).
    y2d = mlp_pallas(X.reshape(N * S, E), *params)   # (N*S, E) bf16

    # Fused equivalent of: transpose(-1,-2).view(N,E,hp,wp) + pixel_shuffle(r):
    #   out[n, c, i*r+ri, j*r+rj] = y[n, i*wp + j, c*r*r + ri*r + rj]
    # One 6-D transpose (in bf16) instead of the transpose + pixel_shuffle chain.
    y = y2d.reshape(N, hp, wp, C, r, r)
    out = y.transpose(0, 3, 1, 4, 2, 5).reshape(B, I, P2, C, H, W)
    return {"X": out, "type": "images"}


def _pixel_shuffle_ref(x, r):
    """torch.nn.functional.pixel_shuffle reference: (N,C*r*r,h,w)->(N,C,h*r,w*r)."""
    N, Crr, h, w = x.shape
    C = Crr // (r * r)
    x = x.reshape(N, C, r, r, h, w)
    x = x.transpose(0, 1, 4, 2, 5, 3)
    return x.reshape(N, C, h * r, w * r)


if __name__ == "__main__":
    # Small, consistent shapes: patch_size=4, image (W=16, H=8) -> 4x2=8 patches,
    # patch_emb_dim E=32 (divisible by patch_size**2=16) -> paired pixel dim C=2.
    B, I, P2 = 2, 2, 2
    patch_size = 4
    image_shape = (16, 8)          # (W, H), as in the PyTorch config
    W, H = image_shape
    E = 32
    S = (H // patch_size) * (W // patch_size)

    key = jax.random.PRNGKey(0)
    kx, k1, kb1, k2, kb2 = jax.random.split(key, 5)
    X = jax.random.normal(kx, (B, I, P2, S, E), dtype=jnp.float32)

    # Deterministic synthetic Linear params (PyTorch-style uniform bound),
    # stored (E_in, E_out) so y = x @ W + b matches x @ W_t.T + b in torch.
    bound = 1.0 / (E ** 0.5)
    w1 = jax.random.uniform(k1, (E, E), minval=-bound, maxval=bound, dtype=jnp.float32)
    b1 = jax.random.uniform(kb1, (E,), minval=-bound, maxval=bound, dtype=jnp.float32)
    w2 = jax.random.uniform(k2, (E, E), minval=-bound, maxval=bound, dtype=jnp.float32)
    b2 = jax.random.uniform(kb2, (E,), minval=-bound, maxval=bound, dtype=jnp.float32)

    params = prepare_projector_params(w1, b1, w2, b2)   # one-time weight prep

    data = {"X": X, "type": "patch"}
    out = patch2pixels_forward(
        data, params, image_shape=image_shape, patch_size=patch_size
    )
    jax.block_until_ready(out["X"])

    C = E // (patch_size * patch_size)
    assert out["X"].shape == (B, I, P2, C, H, W)
    assert out["type"] == "images"

    # Reference: exact f32 math + erf GELU + the original (unfused) layout chain
    # (reshape -> transpose(-1,-2) -> view -> pixel_shuffle -> un-flatten).
    x2d = X.reshape(-1, E)
    y2d_ref = jax.nn.gelu(x2d @ w1 + b1, approximate=False) @ w2 + b2
    N = B * I * P2
    yr = y2d_ref.reshape(N, S, E).transpose(0, 2, 1).reshape(
        N, E, H // patch_size, W // patch_size)
    ref = _pixel_shuffle_ref(yr, patch_size).reshape(B, I, P2, C, H, W)

    # bf16 operands/output + tanh GELU vs f32/erf reference -> loose tolerance.
    got = out["X"].astype(jnp.float32)
    max_err = float(jnp.max(jnp.abs(got - ref)))
    assert jnp.allclose(got, ref, atol=7.5e-2, rtol=7.5e-2), max_err

    print("KERNEL_OK")
</pallas_src>

<mosaic_0001>
module attributes {stable_mosaic.version = 11 : i64} {
  func.func @_mlp_kernel(%arg0: i32, %arg1: i32, %arg2: memref<64x32xf32, #tpu.memory_space<vmem>>, %arg3: memref<32x32xbf16, #tpu.memory_space<vmem>>, %arg4: memref<1x32xf32, #tpu.memory_space<vmem>>, %arg5: memref<32x32xbf16, #tpu.memory_space<vmem>>, %arg6: memref<1x32xf32, #tpu.memory_space<vmem>>, %arg7: memref<64x32xbf16, #tpu.memory_space<vmem>>, %arg8: memref<64x32xf32, #tpu.memory_space<vmem>>) attributes {dimension_semantics = [#tpu.dimension_semantics<parallel>, #tpu.dimension_semantics<arbitrary>], iteration_bounds = array<i64: 1, 1>, scalar_prefetch = 0 : i64, scratch_operands = 1 : i64, tpu.core_type = #tpu.core_type<tc>, window_params = [{transform_indices = @transform_0, window_bounds = array<i64: 64, 32>}, {pipeline_mode = #tpu.pipeline_mode<synchronous>, transform_indices = @transform_1, window_bounds = array<i64: 32, 32>}, {pipeline_mode = #tpu.pipeline_mode<synchronous>, transform_indices = @transform_2, window_bounds = array<i64: 1, 32>}, {pipeline_mode = #tpu.pipeline_mode<synchronous>, transform_indices = @transform_3, window_bounds = array<i64: 32, 32>}, {pipeline_mode = #tpu.pipeline_mode<synchronous>, transform_indices = @transform_4, window_bounds = array<i64: 1, 32>}, {transform_indices = @transform_5, window_bounds = array<i64: 64, 32>}]} {
    %c0_i32 = arith.constant 0 : i32
    %0 = arith.cmpi eq, %arg1, %c0_i32 : i32
    %1 = arith.extui %0 : i1 to i32
    %c0_i32_0 = arith.constant 0 : i32
    %2 = arith.cmpi ne, %1, %c0_i32_0 : i32
    scf.if %2 {
      %c0_19 = arith.constant 0 : index
      %c0_20 = arith.constant 0 : index
      %32 = vector.load %arg6[%c0_19, %c0_20] : memref<1x32xf32, #tpu.memory_space<vmem>>, vector<1x32xf32>
      %33 = vector.shape_cast %32 : vector<1x32xf32> to vector<1x32xf32>
      %34 = vector.broadcast %33 : vector<1x32xf32> to vector<64x32xf32>
      %c0_21 = arith.constant 0 : index
      %c0_22 = arith.constant 0 : index
      %35 = vector.load %arg8[%c0_21, %c0_22] : memref<64x32xf32, #tpu.memory_space<vmem>>, vector<64x32xf32>
      tpu.vector_store %arg8[%c0_21, %c0_22], %34 {strides = array<i32>} : memref<64x32xf32, #tpu.memory_space<vmem>>, vector<64x32xf32>,
    } else {
    }
    %c0 = arith.constant 0 : index
    %c0_1 = arith.constant 0 : index
    %3 = vector.load %arg2[%c0, %c0_1] : memref<64x32xf32, #tpu.memory_space<vmem>>, vector<64x32xf32>
    %4 = arith.truncf %3 : vector<64x32xf32> to vector<64x32xbf16>
    %c0_2 = arith.constant 0 : index
    %c0_3 = arith.constant 0 : index
    %5 = vector.load %arg3[%c0_2, %c0_3] : memref<32x32xbf16, #tpu.memory_space<vmem>>, vector<32x32xbf16>
    %cst = arith.constant dense<0.000000e+00> : vector<64x32xf32>
    %6 = tpu.matmul %4, %5, %cst {dimension_numbers = #tpu.dot_dimension_numbers<[1], [0], [0], [1], [0, 0, 1, 1], [], []>} : vector<64x32xbf16>, vector<32x32xbf16>, vector<64x32xf32> -> vector<64x32xf32>
    %c0_4 = arith.constant 0 : index
    %c0_5 = arith.constant 0 : index
    %7 = vector.load %arg4[%c0_4, %c0_5] : memref<1x32xf32, #tpu.memory_space<vmem>>, vector<1x32xf32>
    %8 = vector.broadcast %7 : vector<1x32xf32> to vector<64x32xf32>
    %9 = arith.addf %6, %8 : vector<64x32xf32>
    %10 = arith.mulf %9, %9 : vector<64x32xf32>
    %11 = arith.mulf %9, %10 : vector<64x32xf32>
    %cst_6 = arith.constant 4.471500e-02 : f32
    %12 = vector.broadcast %cst_6 : f32 to vector<64x32xf32>
    %13 = arith.mulf %12, %11 : vector<64x32xf32>
    %14 = arith.addf %9, %13 : vector<64x32xf32>
    %cst_7 = arith.constant 0.797884583 : f32
    %15 = vector.broadcast %cst_7 : f32 to vector<64x32xf32>
    %16 = arith.mulf %15, %14 : vector<64x32xf32>
    %17 = math.tanh %16 : vector<64x32xf32>
    %cst_8 = arith.constant 1.000000e+00 : f32
    %18 = vector.broadcast %cst_8 : f32 to vector<64x32xf32>
    %19 = arith.addf %18, %17 : vector<64x32xf32>
    %cst_9 = arith.constant 5.000000e-01 : f32
    %20 = vector.broadcast %cst_9 : f32 to vector<64x32xf32>
    %21 = arith.mulf %20, %19 : vector<64x32xf32>
    %22 = arith.mulf %9, %21 : vector<64x32xf32>
    %c0_10 = arith.constant 0 : index
    %c0_11 = arith.constant 0 : index
    %23 = vector.load %arg8[%c0_10, %c0_11] : memref<64x32xf32, #tpu.memory_space<vmem>>, vector<64x32xf32>
    %24 = arith.truncf %22 : vector<64x32xf32> to vector<64x32xbf16>
    %c0_12 = arith.constant 0 : index
    %c0_13 = arith.constant 0 : index
    %25 = vector.load %arg5[%c0_12, %c0_13] : memref<32x32xbf16, #tpu.memory_space<vmem>>, vector<32x32xbf16>
    %cst_14 = arith.constant dense<0.000000e+00> : vector<64x32xf32>
    %26 = tpu.matmul %24, %25, %cst_14 {dimension_numbers = #tpu.dot_dimension_numbers<[1], [0], [0], [1], [0, 0, 1, 1], [], []>} : vector<64x32xbf16>, vector<32x32xbf16>, vector<64x32xf32> -> vector<64x32xf32>
    %27 = arith.addf %23, %26 : vector<64x32xf32>
    %c0_15 = arith.constant 0 : index
    %c0_16 = arith.constant 0 : index
    %28 = vector.load %arg8[%c0_15, %c0_16] : memref<64x32xf32, #tpu.memory_space<vmem>>, vector<64x32xf32>
    tpu.vector_store %arg8[%c0_15, %c0_16], %27 {strides = array<i32>} : memref<64x32xf32, #tpu.memory_space<vmem>>, vector<64x32xf32>,
    %c0_i32_17 = arith.constant 0 : i32
    %29 = arith.cmpi eq, %arg1, %c0_i32_17 : i32
    %30 = arith.extui %29 : i1 to i32
    %c0_i32_18 = arith.constant 0 : i32
    %31 = arith.cmpi ne, %30, %c0_i32_18 : i32
    scf.if %31 {
      %c0_19 = arith.constant 0 : index
      %c0_20 = arith.constant 0 : index
      %32 = vector.load %arg8[%c0_19, %c0_20] : memref<64x32xf32, #tpu.memory_space<vmem>>, vector<64x32xf32>
      %33 = arith.truncf %32 : vector<64x32xf32> to vector<64x32xbf16>
      %c0_21 = arith.constant 0 : index
      %c0_22 = arith.constant 0 : index
      %34 = vector.load %arg7[%c0_21, %c0_22] : memref<64x32xbf16, #tpu.memory_space<vmem>>, vector<64x32xbf16>
      tpu.vector_store %arg7[%c0_21, %c0_22], %33 {strides = array<i32>} : memref<64x32xbf16, #tpu.memory_space<vmem>>, vector<64x32xbf16>,
    } else {
    }
    return
  }
  func.func @transform_0(%arg0: i32, %arg1: i32) -> (i32, i32) {
    %c0_i32 = arith.constant 0 : i32
    %c0_i32_0 = arith.constant 0 : i32
    return %arg0, %c0_i32 : i32, i32
  }
  func.func @transform_1(%arg0: i32, %arg1: i32) -> (i32, i32) {
    %c0_i32 = arith.constant 0 : i32
    %c0_i32_0 = arith.constant 0 : i32
    return %c0_i32, %arg1 : i32, i32
  }
  func.func @transform_2(%arg0: i32, %arg1: i32) -> (i32, i32) {
    %c0_i32 = arith.constant 0 : i32
    %c0_i32_0 = arith.constant 0 : i32
    return %c0_i32, %arg1 : i32, i32
  }
  func.func @transform_3(%arg0: i32, %arg1: i32) -> (i32, i32) {
    %c0_i32 = arith.constant 0 : i32
    %c0_i32_0 = arith.constant 0 : i32
    return %arg1, %c0_i32 : i32, i32
  }
  func.func @transform_4(%arg0: i32, %arg1: i32) -> (i32, i32) {
    %c0_i32 = arith.constant 0 : i32
    %c0_i32_0 = arith.constant 0 : i32
    %c0_i32_1 = arith.constant 0 : i32
    return %c0_i32, %c0_i32_0 : i32, i32
  }
  func.func @transform_5(%arg0: i32, %arg1: i32) -> (i32, i32) {
    %c0_i32 = arith.constant 0 : i32
    %c0_i32_0 = arith.constant 0 : i32
    return %arg0, %c0_i32 : i32, i32
  }
}

</mosaic_0001>

<llo_original>
// kernel: tpu_custom_call.1
$region0: #{tpu_custom_call.1}
  #allocation0 [shape = 'u32[]', space=smem, size = 0x4, offset = 0x4, fixed_abs, tag = 'smem constant byte address 0x4 - core index']
  #allocation1 [shape = 'u32[144,128]{1,0:T(1,128)}', space=vmem, size = 0x12000, scoped, tag = 'internal scratch']
  #allocation2 [shape = 'f32[64,32]{1,0:T(8,128)}', space=vmem, size = 0x8000, scoped, tag = 'scratch operand']
  %s0 = inlined_call_operand.vmem [shape: f32[64,32], index: 0, kind: input, shape index: {}]
  %s1 = inlined_call_operand.vmem [shape: bf16[32,32], index: 1, kind: input, shape index: {}]
  %s2 = inlined_call_operand.vmem [shape: f32[1,32], index: 2, kind: input, shape index: {}]
  %s3 = inlined_call_operand.vmem [shape: bf16[32,32], index: 3, kind: input, shape index: {}]
  %s4 = inlined_call_operand.vmem [shape: f32[1,32], index: 4, kind: input, shape index: {}]
  %s5 = inlined_call_operand.vmem [shape: bf16[64,32], index: 5, kind: output, shape index: {}]
  %s6 = sld [smem:[#allocation0]]
  $region38: #{tpu_custom_call.1} parent=0
    _
  %s8 = ssub.s32 1, %s6
  %s9 = scalar_select 0, %s8, %s6
  // Predicated region
  $region2: #{tpu_custom_call.1} parent=0 // pred_check
    _
  $region3: #{tpu_custom_call.1} parent=0 // pred_check_branch
    %11 = sbr.rel (0) target = $region5
  $region4: #{tpu_custom_call.1} parent=0 // pred_region
    _
  $region5: #{tpu_custom_call.1} parent=0 // pred_fallthru
    _
  // Predicated region
  $region6: #{tpu_custom_call.1} parent=0 // pred_check
    _
  $region7: #{tpu_custom_call.1} parent=0 // pred_check_branch
    %13 = sbr.rel (0) target = $region9
  $region8: #{tpu_custom_call.1} parent=0 // pred_region
    _
  $region9: #{tpu_custom_call.1} parent=0 // pred_fallthru
    _
  // Predicated region
  $region10: #{tpu_custom_call.1} parent=0 // pred_check
    _
  $region11: #{tpu_custom_call.1} parent=0 // pred_check_branch
    %15 = sbr.rel (0) target = $region13
  $region12: #{tpu_custom_call.1} parent=0 // pred_region
    _
  $region13: #{tpu_custom_call.1} parent=0 // pred_fallthru
    _
  // Predicated region
  $region14: #{tpu_custom_call.1} parent=0 // pred_check
    _
  $region15: #{tpu_custom_call.1} parent=0 // pred_check_branch
    %17 = sbr.rel (0) target = $region17
  $region16: #{tpu_custom_call.1} parent=0 // pred_region
    _
  $region17: #{tpu_custom_call.1} parent=0 // pred_fallthru
    _
  // Predicated region
  $region18: #{tpu_custom_call.1} parent=0 // pred_check
    _
  $region19: #{tpu_custom_call.1} parent=0 // pred_check_branch
    %19 = sbr.rel (0) target = $region21
  $region20: #{tpu_custom_call.1} parent=0 // pred_region
    _
  $region21: #{tpu_custom_call.1} parent=0 // pred_fallthru
    _
  %p21 = scmp.eq.s32.totalorder 0, 0
  // Predicated region
  $region22: #{tpu_custom_call.1} parent=0 // pred_check
    %p22 = pneg %p21
  $region23: #{tpu_custom_call.1} parent=0 // pred_check_branch
    %24 = sbr.rel (%p22) target = $region25
  $region24: #{tpu_custom_call.1} parent=0 // pred_region
    %v25 = vld [vmem:[%s4] sm:$0x1]
    %v27 = vlaneseq
    %v28 = vshrl.u32 %v27, 7
    %v29 = vsub.s32 0, %v28
    %v30 = vrot.slane %v25, %v29
    %vm32 = vcmask 261120
    %33 = vst.msk [vmem:[#allocation2] sm:$0xff] %vm32, %v30
    %34 = vst.msk [vmem:[#allocation2 + $0x8] sm:$0xff] %vm32, %v30
    %35 = vst.msk [vmem:[#allocation2 + $0x10] sm:$0xff] %vm32, %v30
    %36 = vst.msk [vmem:[#allocation2 + $0x18] sm:$0xff] %vm32, %v30
    %37 = vst.msk [vmem:[#allocation2 + $0x20] sm:$0xff] %vm32, %v30
    %38 = vst.msk [vmem:[#allocation2 + $0x28] sm:$0xff] %vm32, %v30
    %39 = vst.msk [vmem:[#allocation2 + $0x30] sm:$0xff] %vm32, %v30
    %40 = vst.msk [vmem:[#allocation2 + $0x38] sm:$0xff] %vm32, %v30
  $region25: #{tpu_custom_call.1} parent=0 // pred_fallthru
    _
  %v41 = vld [vmem:[%s0] sm:$0xff]
  %v42 = vld [vmem:[%s0 + $0x8] sm:$0xff]
  %v43 = vld [vmem:[%s0 + $0x10] sm:$0xff]
  %v44 = vld [vmem:[%s0 + $0x18] sm:$0xff]
  %v45 = vld [vmem:[%s0 + $0x20] sm:$0xff]
  %v46 = vld [vmem:[%s0 + $0x28] sm:$0xff]
  %v47 = vld [vmem:[%s0 + $0x30] sm:$0xff]
  %v48 = vld [vmem:[%s0 + $0x38] sm:$0xff]
  %v49 = vpack.c.bf16 %v42, %v41
  %v50 = vpack.c.bf16 %v44, %v43
  %v51 = vpack.c.bf16 %v46, %v45
  %v52 = vpack.c.bf16 %v48, %v47
  %v53 = vld [vmem:[%s1] sm:$0xf]
  %v54 = vld [vmem:[%s1 + $0x4] sm:$0xf]
  %v55 = vld [vmem:[%s1 + $0x8] sm:$0xf]
  %v56 = vld [vmem:[%s1 + $0xc] sm:$0xf]
  %v57 = vld [vmem:[%s2] sm:$0x1]
  %v59 = vlaneseq
  %v60 = vshrl.u32 %v59, 7
  %v61 = vsub.s32 0, %v60
  %v62 = vrot.slane %v57, %v61
  %v68 = vunpack.c.l.b16 %v53
  %v69 = vunpack.c.l.b16 %v54
  %v70 = vunpack.c.l.b16 %v55
  %v71 = vunpack.c.l.b16 %v56
  %v72 = vpack.c.b16 %v69, %v68
  %v73 = vpack.c.b16 %v71, %v70
  %vm76 = vcmask 261120
  %v78 = vsel %vm76, %v49, 0
  %v81 = vsel %vm76, %v50, 0
  %v84 = vsel %vm76, %v51, 0
  %v87 = vsel %vm76, %v52, 0
  %89 = vmatprep.subr.bf16.mxu0 0
  %90 = vmatpush1.bf16.msra.mxu0 0
  %91 = vmatprep.subr.bf16.mxu0 0
  %92 = vmatpush1.bf16.msra.mxu0 0
  %93 = vmatprep.subr.bf16.mxu0 0
  %94 = vmatpush1.bf16.msra.mxu0 0
  %95 = vmatprep.subr.bf16.mxu0 0
  %96 = vmatpush1.bf16.msra.mxu0 0
  %97 = vmatprep.subr.bf16.mxu0 0
  %98 = vmatpush1.bf16.msra.mxu0 0
  %99 = vmatprep.subr.bf16.mxu0 0
  %100 = vmatpush1.bf16.msra.mxu0 0
  %101 = vmatprep.subr.bf16.mxu0 0
  %102 = vmatpush1.bf16.msra.mxu0 %v73
  %103 = vmatprep.subr.bf16.mxu0 0
  %104 = vmatpush1.bf16.msra.mxu0 %v72
  %105 = vmatprep.subr.bf16.mxu0 0
  %106 = vmatpush2.bf16.msra.mxu0 0
  %107 = vmatprep.subr.bf16.mxu0 0
  %108 = vmatpush2.bf16.msra.mxu0 0
  %109 = vmatprep.subr.bf16.mxu0 0
  %110 = vmatpush2.bf16.msra.mxu0 0
  %111 = vmatprep.subr.bf16.mxu0 0
  %112 = vmatpush2.bf16.msra.mxu0 0
  %113 = vmatprep.subr.bf16.mxu0 0
  %114 = vmatpush2.bf16.msra.mxu0 0
  %115 = vmatprep.subr.bf16.mxu0 0
  %116 = vmatpush2.bf16.msra.mxu0 0
  %117 = vmatprep.subr.bf16.mxu0 0
  %118 = vmatpush2.bf16.msra.mxu0 0
  %119 = vmatprep.subr.bf16.mxu0 0
  %120 = vmatpush2.bf16.msra.mxu0 0
  %121 = vmatprep.mubr.bf16.mxu0 0
  %122 = vmatmul.mubr.bf16.gmra.mxu0 %v78
  %v123 = vpop.f32.mrf.mxu0
  %v124 = vadd.f32 %v62, %v123
  %v125 = vpop.f32.mrf.mxu0
  %v126 = vpop.f32.mrf.mxu0
  %v127 = vadd.f32 %v62, %v126
  %v128 = vpop.f32.mrf.mxu0
  %129 = vmatprep.mubr.bf16.mxu0 0
  %130 = vmatmul.mubr.bf16.gmra.mxu0 %v81
  %v131 = vpop.f32.mrf.mxu0
  %v132 = vadd.f32 %v62, %v131
  %v133 = vpop.f32.mrf.mxu0
  %v134 = vpop.f32.mrf.mxu0
  %v135 = vadd.f32 %v62, %v134
  %v136 = vpop.f32.mrf.mxu0
  %137 = vmatprep.mubr.bf16.mxu0 0
  %138 = vmatmul.mubr.bf16.gmra.mxu0 %v84
  %v139 = vpop.f32.mrf.mxu0
  %v140 = vadd.f32 %v62, %v139
  %v141 = vpop.f32.mrf.mxu0
  %v142 = vpop.f32.mrf.mxu0
  %v143 = vadd.f32 %v62, %v142
  %v144 = vpop.f32.mrf.mxu0
  %145 = vmatprep.mubr.bf16.mxu0 0
  %146 = vmatmul.mubr.bf16.gmra.mxu0 %v87
  %v147 = vpop.f32.mrf.mxu0
  %v148 = vadd.f32 %v62, %v147
  %v149 = vpop.f32.mrf.mxu0
  %v150 = vpop.f32.mrf.mxu0
  %v151 = vadd.f32 %v62, %v150
  %v152 = vpop.f32.mrf.mxu0
  %153 = vdwg.mxu0
  %v154 = vmul.f32 %v124, %v124
  %v155 = vmul.f32 %v127, %v127
  %v156 = vmul.f32 %v132, %v132
  %v157 = vmul.f32 %v135, %v135
  %v158 = vmul.f32 %v140, %v140
  %v159 = vmul.f32 %v143, %v143
  %v160 = vmul.f32 %v148, %v148
  %v161 = vmul.f32 %v151, %v151
  %v162 = vmul.f32 %v124, %v154
  %v163 = vmul.f32 %v127, %v155
  %v164 = vmul.f32 %v132, %v156
  %v165 = vmul.f32 %v135, %v157
  %v166 = vmul.f32 %v140, %v158
  %v167 = vmul.f32 %v143, %v159
  %v168 = vmul.f32 %v148, %v160
  %v169 = vmul.f32 %v151, %v161
  %v170 = vmul.f32 %v162, 0.044715
  %v171 = vmul.f32 %v163, 0.044715
  %v172 = vmul.f32 %v164, 0.044715
  %v173 = vmul.f32 %v165, 0.044715
  %v174 = vmul.f32 %v166, 0.044715
  %v175 = vmul.f32 %v167, 0.044715
  %v176 = vmul.f32 %v168, 0.044715
  %v177 = vmul.f32 %v169, 0.044715
  %v178 = vadd.f32 %v124, %v170
  %v179 = vadd.f32 %v127, %v171
  %v180 = vadd.f32 %v132, %v172
  %v181 = vadd.f32 %v135, %v173
  %v182 = vadd.f32 %v140, %v174
  %v183 = vadd.f32 %v143, %v175
  %v184 = vadd.f32 %v148, %v176
  %v185 = vadd.f32 %v151, %v177
  %v186 = vmul.f32 %v178, 0.7978846
  %v187 = vmul.f32 %v179, 0.7978846
  %v188 = vmul.f32 %v180, 0.7978846
  %v189 = vmul.f32 %v181, 0.7978846
  %v190 = vmul.f32 %v182, 0.7978846
  %v191 = vmul.f32 %v183, 0.7978846
  %v192 = vmul.f32 %v184, 0.7978846
  %v193 = vmul.f32 %v185, 0.7978846
  %v194 = vtanh.pop %v186
  %v195 = vtanh.pop %v187
  %v196 = vtanh.pop %v188
  %v197 = vtanh.pop %v189
  %v198 = vtanh.pop %v190
  %v199 = vtanh.pop %v191
  %v200 = vtanh.pop %v192
  %v201 = vtanh.pop %v193
  %v202 = vadd.f32 %v194, 1.0
  %v203 = vadd.f32 %v195, 1.0
  %v204 = vadd.f32 %v196, 1.0
  %v205 = vadd.f32 %v197, 1.0
  %v206 = vadd.f32 %v198, 1.0
  %v207 = vadd.f32 %v199, 1.0
  %v208 = vadd.f32 %v200, 1.0
  %v209 = vadd.f32 %v201, 1.0
  %v210 = vmul.f32 %v202, 0.5
  %v211 = vmul.f32 %v203, 0.5
  %v212 = vmul.f32 %v204, 0.5
  %v213 = vmul.f32 %v205, 0.5
  %v214 = vmul.f32 %v206, 0.5
  %v215 = vmul.f32 %v207, 0.5
  %v216 = vmul.f32 %v208, 0.5
  %v217 = vmul.f32 %v209, 0.5
  %v218 = vmul.f32 %v124, %v210
  %v219 = vmul.f32 %v127, %v211
  %v220 = vmul.f32 %v132, %v212
  %v221 = vmul.f32 %v135, %v213
  %v222 = vmul.f32 %v140, %v214
  %v223 = vmul.f32 %v143, %v215
  %v224 = vmul.f32 %v148, %v216
  %v225 = vmul.f32 %v151, %v217
  %v226 = vld [vmem:[#allocation2] sm:$0xff]
  %v227 = vld [vmem:[#allocation2 + $0x8] sm:$0xff]
  %v228 = vld [vmem:[#allocation2 + $0x10] sm:$0xff]
  %v229 = vld [vmem:[#allocation2 + $0x18] sm:$0xff]
  %v230 = vld [vmem:[#allocation2 + $0x20] sm:$0xff]
  %v231 = vld [vmem:[#allocation2 + $0x28] sm:$0xff]
  %v232 = vld [vmem:[#allocation2 + $0x30] sm:$0xff]
  %v233 = vld [vmem:[#allocation2 + $0x38] sm:$0xff]
  %v234 = vpack.c.bf16 %v219, %v218
  %v235 = vpack.c.bf16 %v221, %v220
  %v236 = vpack.c.bf16 %v223, %v222
  %v237 = vpack.c.bf16 %v225, %v224
  %v238 = vld [vmem:[%s3] sm:$0xf]
  %v239 = vld [vmem:[%s3 + $0x4] sm:$0xf]
  %v240 = vld [vmem:[%s3 + $0x8] sm:$0xf]
  %v241 = vld [vmem:[%s3 + $0xc] sm:$0xf]
  %v246 = vunpack.c.l.b16 %v238
  %v247 = vunpack.c.l.b16 %v239
  %v248 = vunpack.c.l.b16 %v240
  %v249 = vunpack.c.l.b16 %v241
  %v250 = vpack.c.b16 %v247, %v246
  %v251 = vpack.c.b16 %v249, %v248
  %v255 = vsel %vm76, %v234, 0
  %v258 = vsel %vm76, %v235, 0
  %v261 = vsel %vm76, %v236, 0
  %v264 = vsel %vm76, %v237, 0
  %266 = vmatprep.subr.bf16.mxu0 0
  %267 = vmatpush1.bf16.msra.mxu0 0
  %268 = vmatprep.subr.bf16.mxu0 0
  %269 = vmatpush1.bf16.msra.mxu0 0
  %270 = vmatprep.subr.bf16.mxu0 0
  %271 = vmatpush1.bf16.msra.mxu0 0
  %272 = vmatprep.subr.bf16.mxu0 0
  %273 = vmatpush1.bf16.msra.mxu0 0
  %274 = vmatprep.subr.bf16.mxu0 0
  %275 = vmatpush1.bf16.msra.mxu0 0
  %276 = vmatprep.subr.bf16.mxu0 0
  %277 = vmatpush1.bf16.msra.mxu0 0
  %278 = vmatprep.subr.bf16.mxu0 0
  %279 = vmatpush1.bf16.msra.mxu0 %v251
  %280 = vmatprep.subr.bf16.mxu0 0
  %281 = vmatpush1.bf16.msra.mxu0 %v250
  %282 = vmatprep.subr.bf16.mxu0 0
  %283 = vmatpush2.bf16.msra.mxu0 0
  %284 = vmatprep.subr.bf16.mxu0 0
  %285 = vmatpush2.bf16.msra.mxu0 0
  %286 = vmatprep.subr.bf16.mxu0 0
  %287 = vmatpush2.bf16.msra.mxu0 0
  %288 = vmatprep.subr.bf16.mxu0 0
  %289 = vmatpush2.bf16.msra.mxu0 0
  %290 = vmatprep.subr.bf16.mxu0 0
  %291 = vmatpush2.bf16.msra.mxu0 0
  %292 = vmatprep.subr.bf16.mxu0 0
  %293 = vmatpush2.bf16.msra.mxu0 0
  %294 = vmatprep.subr.bf16.mxu0 0
  %295 = vmatpush2.bf16.msra.mxu0 0
  %296 = vmatprep.subr.bf16.mxu0 0
  %297 = vmatpush2.bf16.msra.mxu0 0
  %298 = vmatprep.mubr.bf16.mxu0 0
  %299 = vmatmul.mubr.bf16.gmra.mxu0 %v255
  %v300 = vpop.f32.mrf.mxu0
  %v301 = vadd.f32 0.0, %v300
  %v302 = vpop.f32.mrf.mxu0
  %v303 = vpop.f32.mrf.mxu0
  %v304 = vadd.f32 0.0, %v303
  %v305 = vpop.f32.mrf.mxu0
  %306 = vmatprep.mubr.bf16.mxu0 0
  %307 = vmatmul.mubr.bf16.gmra.mxu0 %v258
  %v308 = vpop.f32.mrf.mxu0
  %v309 = vadd.f32 0.0, %v308
  %v310 = vpop.f32.mrf.mxu0
  %v311 = vpop.f32.mrf.mxu0
  %v312 = vadd.f32 0.0, %v311
  %v313 = vpop.f32.mrf.mxu0
  %314 = vmatprep.mubr.bf16.mxu0 0
  %315 = vmatmul.mubr.bf16.gmra.mxu0 %v261
  %v316 = vpop.f32.mrf.mxu0
  %v317 = vadd.f32 0.0, %v316
  %v318 = vpop.f32.mrf.mxu0
  %v319 = vpop.f32.mrf.mxu0
  %v320 = vadd.f32 0.0, %v319
  %v321 = vpop.f32.mrf.mxu0
  %322 = vmatprep.mubr.bf16.mxu0 0
  %323 = vmatmul.mubr.bf16.gmra.mxu0 %v264
  %v324 = vpop.f32.mrf.mxu0
  %v325 = vadd.f32 0.0, %v324
  %v326 = vpop.f32.mrf.mxu0
  %v327 = vpop.f32.mrf.mxu0
  %v328 = vadd.f32 0.0, %v327
  %v329 = vpop.f32.mrf.mxu0
  %330 = vdwg.mxu0
  %v331 = vadd.f32 %v226, %v301
  %v332 = vadd.f32 %v227, %v304
  %v333 = vadd.f32 %v228, %v309
  %v334 = vadd.f32 %v229, %v312
  %v335 = vadd.f32 %v230, %v317
  %v336 = vadd.f32 %v231, %v320
  %v337 = vadd.f32 %v232, %v325
  %v338 = vadd.f32 %v233, %v328
  %339 = vst.msk [vmem:[#allocation2] sm:$0xff] %vm76, %v331
  %340 = vst.msk [vmem:[#allocation2 + $0x8] sm:$0xff] %vm76, %v332
  %341 = vst.msk [vmem:[#allocation2 + $0x10] sm:$0xff] %vm76, %v333
  %342 = vst.msk [vmem:[#allocation2 + $0x18] sm:$0xff] %vm76, %v334
  %343 = vst.msk [vmem:[#allocation2 + $0x20] sm:$0xff] %vm76, %v335
  %344 = vst.msk [vmem:[#allocation2 + $0x28] sm:$0xff] %vm76, %v336
  %345 = vst.msk [vmem:[#allocation2 + $0x30] sm:$0xff] %vm76, %v337
  %346 = vst.msk [vmem:[#allocation2 + $0x38] sm:$0xff] %vm76, %v338
  // Predicated region
  $region26: #{tpu_custom_call.1} parent=0 // pred_check
    %p347 = pneg %p21
  $region27: #{tpu_custom_call.1} parent=0 // pred_check_branch
    %349 = sbr.rel (%p347) target = $region29
  $region28: #{tpu_custom_call.1} parent=0 // pred_region
    %v350 = vld [vmem:[#allocation2] sm:$0xff]
    %v351 = vld [vmem:[#allocation2 + $0x8] sm:$0xff]
    %v352 = vld [vmem:[#allocation2 + $0x10] sm:$0xff]
    %v353 = vld [vmem:[#allocation2 + $0x18] sm:$0xff]
    %v354 = vld [vmem:[#allocation2 + $0x20] sm:$0xff]
    %v355 = vld [vmem:[#allocation2 + $0x28] sm:$0xff]
    %v356 = vld [vmem:[#allocation2 + $0x30] sm:$0xff]
    %v357 = vld [vmem:[#allocation2 + $0x38] sm:$0xff]
    %v358 = vpack.c.bf16 %v351, %v350
    %v359 = vpack.c.bf16 %v353, %v352
    %v360 = vpack.c.bf16 %v355, %v354
    %v361 = vpack.c.bf16 %v357, %v356
    %v366 = vunpack.c.l.b16 %v358
    %v367 = vunpack.c.h.b16 %v358
    %v368 = vunpack.c.l.b16 %v359
    %v369 = vunpack.c.h.b16 %v359
    %v370 = vunpack.c.l.b16 %v360
    %v371 = vunpack.c.h.b16 %v360
    %v372 = vunpack.c.l.b16 %v361
    %v373 = vunpack.c.h.b16 %v361
    %v374 = vpack.c.b16 %v366, %v366
    %v375 = vpack.c.b16 %v367, %v367
    %v376 = vpack.c.b16 %v368, %v368
    %v377 = vpack.c.b16 %v369, %v369
    %v378 = vpack.c.b16 %v370, %v370
    %v379 = vpack.c.b16 %v371, %v371
    %v380 = vpack.c.b16 %v372, %v372
    %v381 = vpack.c.b16 %v373, %v373
    %vm390 = vcmask 257024
    %391 = vst.msk [vmem:[%s5] sm:$0xf] %vm390, %v374
    %392 = vst.msk [vmem:[%s5 + $0x4] sm:$0xf] %vm390, %v375
    %393 = vst.msk [vmem:[%s5 + $0x8] sm:$0xf] %vm390, %v376
    %394 = vst.msk [vmem:[%s5 + $0xc] sm:$0xf] %vm390, %v377
    %395 = vst.msk [vmem:[%s5 + $0x10] sm:$0xf] %vm390, %v378
    %396 = vst.msk [vmem:[%s5 + $0x14] sm:$0xf] %vm390, %v379
    %397 = vst.msk [vmem:[%s5 + $0x18] sm:$0xf] %vm390, %v380
    %398 = vst.msk [vmem:[%s5 + $0x1c] sm:$0xf] %vm390, %v381
  $region29: #{tpu_custom_call.1} parent=0 // pred_fallthru
    _
  // Predicated region
  $region30: #{tpu_custom_call.1} parent=0 // pred_check
    _
  $region31: #{tpu_custom_call.1} parent=0 // pred_check_branch
    %400 = sbr.rel (0) target = $region33
  $region32: #{tpu_custom_call.1} parent=0 // pred_region
    _
  $region33: #{tpu_custom_call.1} parent=0 // pred_fallthru
    _
  // Predicated region
  $region34: #{tpu_custom_call.1} parent=0 // pred_check
    _
  $region35: #{tpu_custom_call.1} parent=0 // pred_check_branch
    %402 = sbr.rel (0) target = $region37
  $region36: #{tpu_custom_call.1} parent=0 // pred_region
    _
  $region37: #{tpu_custom_call.1} parent=0 // pred_fallthru
    _

</llo_original>
